<compile_context>
chip_gen: v6e
topology: v6e:2x2x1
jax: 0.10.0
libtpu: 0.0.40
codegen_flags: <defaults>
</compile_context>

<pallas_src>
import math

import jax
import jax.numpy as jnp
from jax import lax
from jax.experimental import pallas as pl
from jax.experimental.pallas import tpu as pltpu

_INV_SQRT2 = 0.7071067811865475


# ----------------------------- Pallas kernel -------------------------------- #
def _make_fused_kernel(n_layers, tb):
    """Fused multi-layer season-mixing kernel.

    Ref layout inside the kernel (lane dim = d_model tile TD):
      x0_ref        : (TB, L_0,   TD)   season_list[0] already permuted
      low_refs[i]   : (TB, L_i+1, TD)   season_list[i+1] already permuted
      per layer i   : w1 (L_i+1, L_i), b1 (L_i+1, 1), w2 (L_i+1, L_i+1), b2 (L_i+1, 1)
      out_refs[i]   : (TB, L_i+1, TD)
    """

    def kernel(*refs):
        x0_ref = refs[0]
        low_refs = refs[1:1 + n_layers]
        par_refs = refs[1 + n_layers:1 + 5 * n_layers]
        out_refs = refs[1 + 5 * n_layers:]

        # Each batch row in the block is independent; unroll over TB so every
        # matmul / GELU / residual add is a lane-dense 2-D (L, TD) op with
        # d_model on lanes (MXU contraction side is the tiny seq axis).
        for b in range(tb):
            x = x0_ref[b].astype(jnp.float32)                      # (L_0, TD)
            for i in range(n_layers):
                w1 = par_refs[4 * i][...].astype(jnp.float32)
                b1 = par_refs[4 * i + 1][...].astype(jnp.float32)  # (L_out, 1)
                w2 = par_refs[4 * i + 2][...].astype(jnp.float32)
                b2 = par_refs[4 * i + 3][...].astype(jnp.float32)
                h = jnp.dot(w1, x, preferred_element_type=jnp.float32) + b1
                # exact GELU: 0.5 * h * (1 + erf(h / sqrt(2)))  (nn.GELU default)
                g = 0.5 * h * (1.0 + lax.erf(h * _INV_SQRT2))
                y = jnp.dot(w2, g, preferred_element_type=jnp.float32) + b2
                x = low_refs[i][b].astype(jnp.float32) + y         # (L_{i+1}, TD)
                out_refs[i][b, :, :] = x.astype(out_refs[i].dtype)

    return kernel


# ------------------------- module-level forward pass ------------------------ #
def multi_scale_season_mixing(season_list, params, *, td=None, tb=None,
                              out_dtype=None):
    """JAX/Pallas equivalent of MultiScaleSeasonMixing.forward.

    season_list[i]: (B, D, L_i) with L_i = seq_len // window**i
    params[i] = (w1, b1, w2, b2) in torch.nn.Linear layout (out_features, in_features)
    Returns list of (B, L_i, D) arrays (the .permute(0, 2, 1) outputs).
    """
    n = len(season_list)
    B, D, _ = season_list[0].shape

    # One-time layout change: every season tensor goes to (B, L_i, D) so the
    # d_model axis is lane-dense inside the kernel.  perm[0] is the module's
    # first output anyway; perm[1:] replace the previous lane-sparse in-kernel
    # transpose of the residuals.
    perm = [jnp.transpose(s, (0, 2, 1)) for s in season_list]
    if n == 1:
        return perm

    n_layers = n - 1
    assert len(params) >= n_layers
    seq_lens = [s.shape[2] for s in season_list]          # L_0 .. L_{n-1}
    dtype = season_list[0].dtype if out_dtype is None else out_dtype

    # Block sizing: target large (>=256 KiB) blocks per grid step.
    if tb is None:
        tb = min(B, 8)
    if td is None:
        td = D if D <= 2048 else 2048
    if td != D:
        td = max(128, (td // 128) * 128)                  # lane-dense tiles
    grid = (pl.cdiv(B, tb), pl.cdiv(D, td))
    # TODO(synk): for D < 128 the output lane width is below a full vreg row
    # (masked vst); folding B*D onto the lane axis would fix it but requires a
    # wrapper re-layout of every output, which only pays off for very small D.

    def act_spec(L):
        return pl.BlockSpec((tb, L, td), lambda b, d: (b, 0, d))

    def const_spec(shape):
        return pl.BlockSpec(shape, lambda b, d: tuple(0 for _ in shape))

    in_specs = [act_spec(seq_lens[0])]
    in_specs += [act_spec(seq_lens[i + 1]) for i in range(n_layers)]

    flat_params = []
    for i in range(n_layers):
        w1, b1, w2, b2 = params[i]
        l_in, l_out = seq_lens[i], seq_lens[i + 1]
        assert w1.shape == (l_out, l_in) and w2.shape == (l_out, l_out)
        flat_params += [w1, b1.reshape(l_out, 1), w2, b2.reshape(l_out, 1)]
        in_specs += [const_spec((l_out, l_in)), const_spec((l_out, 1)),
                     const_spec((l_out, l_out)), const_spec((l_out, 1))]

    out_specs = [act_spec(seq_lens[i + 1]) for i in range(n_layers)]
    out_shape = [jax.ShapeDtypeStruct((B, seq_lens[i + 1], D), dtype)
                 for i in range(n_layers)]

    itemsize = int(jnp.dtype(dtype).itemsize)
    cost = pl.CostEstimate(
        flops=int(sum(2 * B * D * seq_lens[i + 1] * (seq_lens[i] + seq_lens[i + 1])
                      for i in range(n_layers))),
        transcendentals=int(sum(B * D * seq_lens[i + 1] for i in range(n_layers))),
        bytes_accessed=int(
            itemsize * B * D * (seq_lens[0] + 2 * sum(seq_lens[1:]))
            + 4 * sum(seq_lens[i + 1] * (seq_lens[i] + seq_lens[i + 1] + 2)
                      for i in range(n_layers))),
    )

    outs = pl.pallas_call(
        _make_fused_kernel(n_layers, tb),
        grid=grid,
        in_specs=in_specs,
        out_specs=out_specs,
        out_shape=out_shape,
        compiler_params=pltpu.CompilerParams(
            dimension_semantics=("parallel", "parallel"),
            vmem_limit_bytes=48 * 1024 * 1024,  # safe on v7x's 64 MiB physical VMEM
        ),
        cost_estimate=cost,
    )(perm[0], *perm[1:], *flat_params)

    return [perm[0]] + list(outs)


# ----------------------------- reference (pure JAX) ------------------------- #
def _ref_forward(season_list, params):
    def gelu(x):
        return 0.5 * x * (1.0 + lax.erf(x / jnp.sqrt(2.0)))

    n = len(season_list)
    out_high = season_list[0]
    out_low = season_list[1]
    outs = [jnp.transpose(out_high, (0, 2, 1))]
    for i in range(n - 1):
        w1, b1, w2, b2 = params[i]                     # torch layout: (out, in)
        h = jnp.einsum("bdl,ml->bdm", out_high, w1) + b1
        y = jnp.einsum("bdm,nm->bdn", gelu(h), w2) + b2
        out_low = out_low + y
        out_high = out_low
        if i + 2 <= n - 1:
            out_low = season_list[i + 2]
        outs.append(jnp.transpose(out_high, (0, 2, 1)))
    return outs


# ----------------------------------- main ----------------------------------- #
def _init_params(key, seq_len, window, layers):
    """torch.nn.Linear-style uniform(-1/sqrt(fan_in), 1/sqrt(fan_in)), torch layout."""
    params = []
    for i in range(layers):
        l_in = seq_len // window ** i
        l_out = seq_len // window ** (i + 1)
        key, k1, k2, k3, k4 = jax.random.split(key, 5)
        bound1 = 1.0 / math.sqrt(l_in)
        bound2 = 1.0 / math.sqrt(l_out)
        w1 = jax.random.uniform(k1, (l_out, l_in), jnp.float32, -bound1, bound1)
        b1 = jax.random.uniform(k2, (l_out,), jnp.float32, -bound1, bound1)
        w2 = jax.random.uniform(k3, (l_out, l_out), jnp.float32, -bound2, bound2)
        b2 = jax.random.uniform(k4, (l_out,), jnp.float32, -bound2, bound2)
        params.append((w1, b1, w2, b2))
    return params


def _run_config(seq_len, window, layers, B, D, td=None, seed=0):
    key = jax.random.PRNGKey(seed)
    key, kp = jax.random.split(key)
    params = _init_params(kp, seq_len, window, layers)

    season_list = []
    for i in range(layers + 1):
        key, kx = jax.random.split(key)
        L_i = seq_len // window ** i
        season_list.append(jax.random.normal(kx, (B, D, L_i), jnp.float32))

    outs = multi_scale_season_mixing(season_list, params, td=td)
    outs = [jax.block_until_ready(o) for o in outs]

    refs = _ref_forward(season_list, params)
    for o, r in zip(outs, refs):
        assert o.shape == r.shape, (o.shape, r.shape)
        assert jnp.allclose(o, r, atol=1e-5, rtol=1e-5), \
            float(jnp.max(jnp.abs(o - r)))


if __name__ == "__main__":
    # configs = (seq_len, down_sampling_window, down_sampling_layers)
    # Small demo matching the module spec (full-D, single-tile path).
    _run_config(seq_len=16, window=2, layers=2, B=2, D=4)
    # Lane-dense, multi-tile path (exercises the D-tiled grid and TB batching).
    _run_config(seq_len=16, window=2, layers=2, B=4, D=256, td=128)
    print("KERNEL_OK")
</pallas_src>

<mosaic_0001>
module attributes {stable_mosaic.version = 11 : i64} {
  func.func @kernel(%arg0: i32, %arg1: i32, %arg2: memref<2x16x4xf32, #tpu.memory_space<vmem>>, %arg3: memref<2x8x4xf32, #tpu.memory_space<vmem>>, %arg4: memref<2x4x4xf32, #tpu.memory_space<vmem>>, %arg5: memref<8x16xf32, #tpu.memory_space<vmem>>, %arg6: memref<8x1xf32, #tpu.memory_space<vmem>>, %arg7: memref<8x8xf32, #tpu.memory_space<vmem>>, %arg8: memref<8x1xf32, #tpu.memory_space<vmem>>, %arg9: memref<4x8xf32, #tpu.memory_space<vmem>>, %arg10: memref<4x1xf32, #tpu.memory_space<vmem>>, %arg11: memref<4x4xf32, #tpu.memory_space<vmem>>, %arg12: memref<4x1xf32, #tpu.memory_space<vmem>>, %arg13: memref<2x8x4xf32, #tpu.memory_space<vmem>>, %arg14: memref<2x4x4xf32, #tpu.memory_space<vmem>>) attributes {dimension_semantics = [#tpu.dimension_semantics<parallel>, #tpu.dimension_semantics<parallel>], iteration_bounds = array<i64: 1, 1>, scalar_prefetch = 0 : i64, scratch_operands = 0 : i64, tpu.core_type = #tpu.core_type<tc>, window_params = [{transform_indices = @transform_0, window_bounds = array<i64: 2, 16, 4>}, {transform_indices = @transform_1, window_bounds = array<i64: 2, 8, 4>}, {transform_indices = @transform_2, window_bounds = array<i64: 2, 4, 4>}, {pipeline_mode = #tpu.pipeline_mode<synchronous>, transform_indices = @transform_3, window_bounds = array<i64: 8, 16>}, {pipeline_mode = #tpu.pipeline_mode<synchronous>, transform_indices = @transform_4, window_bounds = array<i64: 8, 1>}, {pipeline_mode = #tpu.pipeline_mode<synchronous>, transform_indices = @transform_5, window_bounds = array<i64: 8, 8>}, {pipeline_mode = #tpu.pipeline_mode<synchronous>, transform_indices = @transform_6, window_bounds = array<i64: 8, 1>}, {pipeline_mode = #tpu.pipeline_mode<synchronous>, transform_indices = @transform_7, window_bounds = array<i64: 4, 8>}, {pipeline_mode = #tpu.pipeline_mode<synchronous>, transform_indices = @transform_8, window_bounds = array<i64: 4, 1>}, {pipeline_mode = #tpu.pipeline_mode<synchronous>, transform_indices = @transform_9, window_bounds = array<i64: 4, 4>}, {pipeline_mode = #tpu.pipeline_mode<synchronous>, transform_indices = @transform_10, window_bounds = array<i64: 4, 1>}, {transform_indices = @transform_11, window_bounds = array<i64: 2, 8, 4>}, {transform_indices = @transform_12, window_bounds = array<i64: 2, 4, 4>}]} {
    %c0 = arith.constant 0 : index
    %c0_0 = arith.constant 0 : index
    %c0_1 = arith.constant 0 : index
    %0 = vector.load %arg2[%c0, %c0_0, %c0_1] : memref<2x16x4xf32, #tpu.memory_space<vmem>>, vector<1x16x4xf32>
    %1 = vector.shape_cast %0 : vector<1x16x4xf32> to vector<16x4xf32>
    %c0_2 = arith.constant 0 : index
    %c0_3 = arith.constant 0 : index
    %2 = vector.load %arg5[%c0_2, %c0_3] : memref<8x16xf32, #tpu.memory_space<vmem>>, vector<8x16xf32>
    %c0_4 = arith.constant 0 : index
    %c0_5 = arith.constant 0 : index
    %3 = vector.load %arg6[%c0_4, %c0_5] : memref<8x1xf32, #tpu.memory_space<vmem>>, vector<8x1xf32>
    %c0_6 = arith.constant 0 : index
    %c0_7 = arith.constant 0 : index
    %4 = vector.load %arg7[%c0_6, %c0_7] : memref<8x8xf32, #tpu.memory_space<vmem>>, vector<8x8xf32>
    %c0_8 = arith.constant 0 : index
    %c0_9 = arith.constant 0 : index
    %5 = vector.load %arg8[%c0_8, %c0_9] : memref<8x1xf32, #tpu.memory_space<vmem>>, vector<8x1xf32>
    %cst = arith.constant dense<0.000000e+00> : vector<8x4xf32>
    %6 = tpu.matmul %2, %1, %cst {dimension_numbers = #tpu.dot_dimension_numbers<[1], [0], [0], [1], [0, 0, 1, 1], [], []>} : vector<8x16xf32>, vector<16x4xf32>, vector<8x4xf32> -> vector<8x4xf32>
    %7 = vector.broadcast %3 : vector<8x1xf32> to vector<8x4xf32>
    %8 = arith.addf %6, %7 : vector<8x4xf32>
    %cst_10 = arith.constant 5.000000e-01 : f32
    %9 = vector.broadcast %cst_10 : f32 to vector<8x4xf32>
    %10 = arith.mulf %9, %8 : vector<8x4xf32>
    %cst_11 = arith.constant 0.707106769 : f32
    %11 = vector.broadcast %cst_11 : f32 to vector<8x4xf32>
    %12 = arith.mulf %8, %11 : vector<8x4xf32>
    %13 = math.erf %12 : vector<8x4xf32>
    %cst_12 = arith.constant 1.000000e+00 : f32
    %14 = vector.broadcast %cst_12 : f32 to vector<8x4xf32>
    %15 = arith.addf %14, %13 : vector<8x4xf32>
    %16 = arith.mulf %10, %15 : vector<8x4xf32>
    %cst_13 = arith.constant dense<0.000000e+00> : vector<8x4xf32>
    %17 = tpu.matmul %4, %16, %cst_13 {dimension_numbers = #tpu.dot_dimension_numbers<[1], [0], [0], [1], [0, 0, 1, 1], [], []>} : vector<8x8xf32>, vector<8x4xf32>, vector<8x4xf32> -> vector<8x4xf32>
    %18 = vector.broadcast %5 : vector<8x1xf32> to vector<8x4xf32>
    %19 = arith.addf %17, %18 : vector<8x4xf32>
    %c0_14 = arith.constant 0 : index
    %c0_15 = arith.constant 0 : index
    %c0_16 = arith.constant 0 : index
    %20 = vector.load %arg3[%c0_14, %c0_15, %c0_16] : memref<2x8x4xf32, #tpu.memory_space<vmem>>, vector<1x8x4xf32>
    %21 = vector.shape_cast %20 : vector<1x8x4xf32> to vector<8x4xf32>
    %22 = arith.addf %21, %19 : vector<8x4xf32>
    %c0_17 = arith.constant 0 : index
    %c0_18 = arith.constant 0 : index
    %c0_19 = arith.constant 0 : index
    %23 = vector.load %arg13[%c0_17, %c0_18, %c0_19] : memref<2x8x4xf32, #tpu.memory_space<vmem>>, vector<1x8x4xf32>
    %24 = vector.shape_cast %23 : vector<1x8x4xf32> to vector<8x4xf32>
    %25 = vector.shape_cast %22 : vector<8x4xf32> to vector<1x8x4xf32>
    tpu.vector_store %arg13[%c0_17, %c0_18, %c0_19], %25 {strides = array<i32>} : memref<2x8x4xf32, #tpu.memory_space<vmem>>, vector<1x8x4xf32>,
    %c0_20 = arith.constant 0 : index
    %c0_21 = arith.constant 0 : index
    %26 = vector.load %arg9[%c0_20, %c0_21] : memref<4x8xf32, #tpu.memory_space<vmem>>, vector<4x8xf32>
    %c0_22 = arith.constant 0 : index
    %c0_23 = arith.constant 0 : index
    %27 = vector.load %arg10[%c0_22, %c0_23] : memref<4x1xf32, #tpu.memory_space<vmem>>, vector<4x1xf32>
    %c0_24 = arith.constant 0 : index
    %c0_25 = arith.constant 0 : index
    %28 = vector.load %arg11[%c0_24, %c0_25] : memref<4x4xf32, #tpu.memory_space<vmem>>, vector<4x4xf32>
    %c0_26 = arith.constant 0 : index
    %c0_27 = arith.constant 0 : index
    %29 = vector.load %arg12[%c0_26, %c0_27] : memref<4x1xf32, #tpu.memory_space<vmem>>, vector<4x1xf32>
    %cst_28 = arith.constant dense<0.000000e+00> : vector<4x4xf32>
    %30 = tpu.matmul %26, %22, %cst_28 {dimension_numbers = #tpu.dot_dimension_numbers<[1], [0], [0], [1], [0, 0, 1, 1], [], []>} : vector<4x8xf32>, vector<8x4xf32>, vector<4x4xf32> -> vector<4x4xf32>
    %31 = vector.broadcast %27 : vector<4x1xf32> to vector<4x4xf32>
    %32 = arith.addf %30, %31 : vector<4x4xf32>
    %cst_29 = arith.constant 5.000000e-01 : f32
    %33 = vector.broadcast %cst_29 : f32 to vector<4x4xf32>
    %34 = arith.mulf %33, %32 : vector<4x4xf32>
    %cst_30 = arith.constant 0.707106769 : f32
    %35 = vector.broadcast %cst_30 : f32 to vector<4x4xf32>
    %36 = arith.mulf %32, %35 : vector<4x4xf32>
    %37 = math.erf %36 : vector<4x4xf32>
    %cst_31 = arith.constant 1.000000e+00 : f32
    %38 = vector.broadcast %cst_31 : f32 to vector<4x4xf32>
    %39 = arith.addf %38, %37 : vector<4x4xf32>
    %40 = arith.mulf %34, %39 : vector<4x4xf32>
    %cst_32 = arith.constant dense<0.000000e+00> : vector<4x4xf32>
    %41 = tpu.matmul %28, %40, %cst_32 {dimension_numbers = #tpu.dot_dimension_numbers<[1], [0], [0], [1], [0, 0, 1, 1], [], []>} : vector<4x4xf32>, vector<4x4xf32>, vector<4x4xf32> -> vector<4x4xf32>
    %42 = vector.broadcast %29 : vector<4x1xf32> to vector<4x4xf32>
    %43 = arith.addf %41, %42 : vector<4x4xf32>
    %c0_33 = arith.constant 0 : index
    %c0_34 = arith.constant 0 : index
    %c0_35 = arith.constant 0 : index
    %44 = vector.load %arg4[%c0_33, %c0_34, %c0_35] : memref<2x4x4xf32, #tpu.memory_space<vmem>>, vector<1x4x4xf32>
    %45 = vector.shape_cast %44 : vector<1x4x4xf32> to vector<4x4xf32>
    %46 = arith.addf %45, %43 : vector<4x4xf32>
    %c0_36 = arith.constant 0 : index
    %c0_37 = arith.constant 0 : index
    %c0_38 = arith.constant 0 : index
    %47 = vector.load %arg14[%c0_36, %c0_37, %c0_38] : memref<2x4x4xf32, #tpu.memory_space<vmem>>, vector<1x4x4xf32>
    %48 = vector.shape_cast %47 : vector<1x4x4xf32> to vector<4x4xf32>
    %49 = vector.shape_cast %46 : vector<4x4xf32> to vector<1x4x4xf32>
    tpu.vector_store %arg14[%c0_36, %c0_37, %c0_38], %49 {strides = array<i32>} : memref<2x4x4xf32, #tpu.memory_space<vmem>>, vector<1x4x4xf32>,
    %c1 = arith.constant 1 : index
    %c0_39 = arith.constant 0 : index
    %c0_40 = arith.constant 0 : index
    %50 = vector.load %arg2[%c1, %c0_39, %c0_40] : memref<2x16x4xf32, #tpu.memory_space<vmem>>, vector<1x16x4xf32>
    %51 = vector.shape_cast %50 : vector<1x16x4xf32> to vector<16x4xf32>
    %c0_41 = arith.constant 0 : index
    %c0_42 = arith.constant 0 : index
    %52 = vector.load %arg5[%c0_41, %c0_42] : memref<8x16xf32, #tpu.memory_space<vmem>>, vector<8x16xf32>
    %c0_43 = arith.constant 0 : index
    %c0_44 = arith.constant 0 : index
    %53 = vector.load %arg6[%c0_43, %c0_44] : memref<8x1xf32, #tpu.memory_space<vmem>>, vector<8x1xf32>
    %c0_45 = arith.constant 0 : index
    %c0_46 = arith.constant 0 : index
    %54 = vector.load %arg7[%c0_45, %c0_46] : memref<8x8xf32, #tpu.memory_space<vmem>>, vector<8x8xf32>
    %c0_47 = arith.constant 0 : index
    %c0_48 = arith.constant 0 : index
    %55 = vector.load %arg8[%c0_47, %c0_48] : memref<8x1xf32, #tpu.memory_space<vmem>>, vector<8x1xf32>
    %cst_49 = arith.constant dense<0.000000e+00> : vector<8x4xf32>
    %56 = tpu.matmul %52, %51, %cst_49 {dimension_numbers = #tpu.dot_dimension_numbers<[1], [0], [0], [1], [0, 0, 1, 1], [], []>} : vector<8x16xf32>, vector<16x4xf32>, vector<8x4xf32> -> vector<8x4xf32>
    %57 = vector.broadcast %53 : vector<8x1xf32> to vector<8x4xf32>
    %58 = arith.addf %56, %57 : vector<8x4xf32>
    %cst_50 = arith.constant 5.000000e-01 : f32
    %59 = vector.broadcast %cst_50 : f32 to vector<8x4xf32>
    %60 = arith.mulf %59, %58 : vector<8x4xf32>
    %cst_51 = arith.constant 0.707106769 : f32
    %61 = vector.broadcast %cst_51 : f32 to vector<8x4xf32>
    %62 = arith.mulf %58, %61 : vector<8x4xf32>
    %63 = math.erf %62 : vector<8x4xf32>
    %cst_52 = arith.constant 1.000000e+00 : f32
    %64 = vector.broadcast %cst_52 : f32 to vector<8x4xf32>
    %65 = arith.addf %64, %63 : vector<8x4xf32>
    %66 = arith.mulf %60, %65 : vector<8x4xf32>
    %cst_53 = arith.constant dense<0.000000e+00> : vector<8x4xf32>
    %67 = tpu.matmul %54, %66, %cst_53 {dimension_numbers = #tpu.dot_dimension_numbers<[1], [0], [0], [1], [0, 0, 1, 1], [], []>} : vector<8x8xf32>, vector<8x4xf32>, vector<8x4xf32> -> vector<8x4xf32>
    %68 = vector.broadcast %55 : vector<8x1xf32> to vector<8x4xf32>
    %69 = arith.addf %67, %68 : vector<8x4xf32>
    %c1_54 = arith.constant 1 : index
    %c0_55 = arith.constant 0 : index
    %c0_56 = arith.constant 0 : index
    %70 = vector.load %arg3[%c1_54, %c0_55, %c0_56] : memref<2x8x4xf32, #tpu.memory_space<vmem>>, vector<1x8x4xf32>
    %71 = vector.shape_cast %70 : vector<1x8x4xf32> to vector<8x4xf32>
    %72 = arith.addf %71, %69 : vector<8x4xf32>
    %c1_57 = arith.constant 1 : index
    %c0_58 = arith.constant 0 : index
    %c0_59 = arith.constant 0 : index
    %73 = vector.load %arg13[%c1_57, %c0_58, %c0_59] : memref<2x8x4xf32, #tpu.memory_space<vmem>>, vector<1x8x4xf32>
    %74 = vector.shape_cast %73 : vector<1x8x4xf32> to vector<8x4xf32>
    %75 = vector.shape_cast %72 : vector<8x4xf32> to vector<1x8x4xf32>
    tpu.vector_store %arg13[%c1_57, %c0_58, %c0_59], %75 {strides = array<i32>} : memref<2x8x4xf32, #tpu.memory_space<vmem>>, vector<1x8x4xf32>,
    %c0_60 = arith.constant 0 : index
    %c0_61 = arith.constant 0 : index
    %76 = vector.load %arg9[%c0_60, %c0_61] : memref<4x8xf32, #tpu.memory_space<vmem>>, vector<4x8xf32>
    %c0_62 = arith.constant 0 : index
    %c0_63 = arith.constant 0 : index
    %77 = vector.load %arg10[%c0_62, %c0_63] : memref<4x1xf32, #tpu.memory_space<vmem>>, vector<4x1xf32>
    %c0_64 = arith.constant 0 : index
    %c0_65 = arith.constant 0 : index
    %78 = vector.load %arg11[%c0_64, %c0_65] : memref<4x4xf32, #tpu.memory_space<vmem>>, vector<4x4xf32>
    %c0_66 = arith.constant 0 : index
    %c0_67 = arith.constant 0 : index
    %79 = vector.load %arg12[%c0_66, %c0_67] : memref<4x1xf32, #tpu.memory_space<vmem>>, vector<4x1xf32>
    %cst_68 = arith.constant dense<0.000000e+00> : vector<4x4xf32>
    %80 = tpu.matmul %76, %72, %cst_68 {dimension_numbers = #tpu.dot_dimension_numbers<[1], [0], [0], [1], [0, 0, 1, 1], [], []>} : vector<4x8xf32>, vector<8x4xf32>, vector<4x4xf32> -> vector<4x4xf32>
    %81 = vector.broadcast %77 : vector<4x1xf32> to vector<4x4xf32>
    %82 = arith.addf %80, %81 : vector<4x4xf32>
    %cst_69 = arith.constant 5.000000e-01 : f32
    %83 = vector.broadcast %cst_69 : f32 to vector<4x4xf32>
    %84 = arith.mulf %83, %82 : vector<4x4xf32>
    %cst_70 = arith.constant 0.707106769 : f32
    %85 = vector.broadcast %cst_70 : f32 to vector<4x4xf32>
    %86 = arith.mulf %82, %85 : vector<4x4xf32>
    %87 = math.erf %86 : vector<4x4xf32>
    %cst_71 = arith.constant 1.000000e+00 : f32
    %88 = vector.broadcast %cst_71 : f32 to vector<4x4xf32>
    %89 = arith.addf %88, %87 : vector<4x4xf32>
    %90 = arith.mulf %84, %89 : vector<4x4xf32>
    %cst_72 = arith.constant dense<0.000000e+00> : vector<4x4xf32>
    %91 = tpu.matmul %78, %90, %cst_72 {dimension_numbers = #tpu.dot_dimension_numbers<[1], [0], [0], [1], [0, 0, 1, 1], [], []>} : vector<4x4xf32>, vector<4x4xf32>, vector<4x4xf32> -> vector<4x4xf32>
    %92 = vector.broadcast %79 : vector<4x1xf32> to vector<4x4xf32>
    %93 = arith.addf %91, %92 : vector<4x4xf32>
    %c1_73 = arith.constant 1 : index
    %c0_74 = arith.constant 0 : index
    %c0_75 = arith.constant 0 : index
    %94 = vector.load %arg4[%c1_73, %c0_74, %c0_75] : memref<2x4x4xf32, #tpu.memory_space<vmem>>, vector<1x4x4xf32>
    %95 = vector.shape_cast %94 : vector<1x4x4xf32> to vector<4x4xf32>
    %96 = arith.addf %95, %93 : vector<4x4xf32>
    %c1_76 = arith.constant 1 : index
    %c0_77 = arith.constant 0 : index
    %c0_78 = arith.constant 0 : index
    %97 = vector.load %arg14[%c1_76, %c0_77, %c0_78] : memref<2x4x4xf32, #tpu.memory_space<vmem>>, vector<1x4x4xf32>
    %98 = vector.shape_cast %97 : vector<1x4x4xf32> to vector<4x4xf32>
    %99 = vector.shape_cast %96 : vector<4x4xf32> to vector<1x4x4xf32>
    tpu.vector_store %arg14[%c1_76, %c0_77, %c0_78], %99 {strides = array<i32>} : memref<2x4x4xf32, #tpu.memory_space<vmem>>, vector<1x4x4xf32>,
    return
  }
  func.func @transform_0(%arg0: i32, %arg1: i32) -> (i32, i32, i32) {
    %c0_i32 = arith.constant 0 : i32
    %c0_i32_0 = arith.constant 0 : i32
    return %arg0, %c0_i32, %arg1 : i32, i32, i32
  }
  func.func @transform_1(%arg0: i32, %arg1: i32) -> (i32, i32, i32) {
    %c0_i32 = arith.constant 0 : i32
    %c0_i32_0 = arith.constant 0 : i32
    return %arg0, %c0_i32, %arg1 : i32, i32, i32
  }
  func.func @transform_2(%arg0: i32, %arg1: i32) -> (i32, i32, i32) {
    %c0_i32 = arith.constant 0 : i32
    %c0_i32_0 = arith.constant 0 : i32
    return %arg0, %c0_i32, %arg1 : i32, i32, i32
  }
  func.func @transform_3(%arg0: i32, %arg1: i32) -> (i32, i32) {
    %c0_i32 = arith.constant 0 : i32
    %c0_i32_0 = arith.constant 0 : i32
    %c0_i32_1 = arith.constant 0 : i32
    return %c0_i32, %c0_i32_0 : i32, i32
  }
  func.func @transform_4(%arg0: i32, %arg1: i32) -> (i32, i32) {
    %c0_i32 = arith.constant 0 : i32
    %c0_i32_0 = arith.constant 0 : i32
    %c0_i32_1 = arith.constant 0 : i32
    return %c0_i32, %c0_i32_0 : i32, i32
  }
  func.func @transform_5(%arg0: i32, %arg1: i32) -> (i32, i32) {
    %c0_i32 = arith.constant 0 : i32
    %c0_i32_0 = arith.constant 0 : i32
    %c0_i32_1 = arith.constant 0 : i32
    return %c0_i32, %c0_i32_0 : i32, i32
  }
  func.func @transform_6(%arg0: i32, %arg1: i32) -> (i32, i32) {
    %c0_i32 = arith.constant 0 : i32
    %c0_i32_0 = arith.constant 0 : i32
    %c0_i32_1 = arith.constant 0 : i32
    return %c0_i32, %c0_i32_0 : i32, i32
  }
  func.func @transform_7(%arg0: i32, %arg1: i32) -> (i32, i32) {
    %c0_i32 = arith.constant 0 : i32
    %c0_i32_0 = arith.constant 0 : i32
    %c0_i32_1 = arith.constant 0 : i32
    return %c0_i32, %c0_i32_0 : i32, i32
  }
  func.func @transform_8(%arg0: i32, %arg1: i32) -> (i32, i32) {
    %c0_i32 = arith.constant 0 : i32
    %c0_i32_0 = arith.constant 0 : i32
    %c0_i32_1 = arith.constant 0 : i32
    return %c0_i32, %c0_i32_0 : i32, i32
  }
  func.func @transform_9(%arg0: i32, %arg1: i32) -> (i32, i32) {
    %c0_i32 = arith.constant 0 : i32
    %c0_i32_0 = arith.constant 0 : i32
    %c0_i32_1 = arith.constant 0 : i32
    return %c0_i32, %c0_i32_0 : i32, i32
  }
  func.func @transform_10(%arg0: i32, %arg1: i32) -> (i32, i32) {
    %c0_i32 = arith.constant 0 : i32
    %c0_i32_0 = arith.constant 0 : i32
    %c0_i32_1 = arith.constant 0 : i32
    return %c0_i32, %c0_i32_0 : i32, i32
  }
  func.func @transform_11(%arg0: i32, %arg1: i32) -> (i32, i32, i32) {
    %c0_i32 = arith.constant 0 : i32
    %c0_i32_0 = arith.constant 0 : i32
    return %arg0, %c0_i32, %arg1 : i32, i32, i32
  }
  func.func @transform_12(%arg0: i32, %arg1: i32) -> (i32, i32, i32) {
    %c0_i32 = arith.constant 0 : i32
    %c0_i32_0 = arith.constant 0 : i32
    return %arg0, %c0_i32, %arg1 : i32, i32, i32
  }
}

</mosaic_0001>

<llo_original>
// kernel: tpu_custom_call.1
$region0: #{tpu_custom_call.1}
  #allocation0 [shape = 'u32[]', space=smem, size = 0x4, offset = 0x4, fixed_abs, tag = 'smem constant byte address 0x4 - core index']
  #allocation1 [shape = 'u32[144,128]{1,0:T(1,128)}', space=vmem, size = 0x12000, scoped, tag = 'internal scratch']
  %s0 = inlined_call_operand.vmem [shape: f32[2,16,4], index: 0, kind: input, shape index: {}]
  %s1 = inlined_call_operand.vmem [shape: f32[2,8,4], index: 1, kind: input, shape index: {}]
  %s2 = inlined_call_operand.vmem [shape: f32[2,4,4], index: 2, kind: input, shape index: {}]
  %s3 = inlined_call_operand.vmem [shape: f32[8,16], index: 3, kind: input, shape index: {}]
  %s4 = inlined_call_operand.vmem [shape: f32[8,1], index: 4, kind: input, shape index: {}]
  %s5 = inlined_call_operand.vmem [shape: f32[8,8], index: 5, kind: input, shape index: {}]
  %s6 = inlined_call_operand.vmem [shape: f32[8,1], index: 6, kind: input, shape index: {}]
  %s7 = inlined_call_operand.vmem [shape: f32[4,8], index: 7, kind: input, shape index: {}]
  %s8 = inlined_call_operand.vmem [shape: f32[4,1], index: 8, kind: input, shape index: {}]
  %s9 = inlined_call_operand.vmem [shape: f32[4,4], index: 9, kind: input, shape index: {}]
  %s10 = inlined_call_operand.vmem [shape: f32[4,1], index: 10, kind: input, shape index: {}]
  %s11 = inlined_call_operand.vmem [shape: f32[2,8,4], index: 11, kind: output, shape index: {0}]
  %s12 = inlined_call_operand.hbm [shape: f32[2,4,4], index: 12, kind: output, shape index: {1}]
  %13 = xla_tuple %s11, %s12
  %s14 = sld [smem:[#allocation0]]
  $region62: #{tpu_custom_call.1} parent=0
    _
  %s16 = ssub.s32 1, %s14
  %s17 = scalar_select 0, %s16, %s14
  $region1: #{tpu_custom_call.1} parent=0
    #allocation2 [shape = 'u8[4096]{0}', space=vmem, size = 0x1000, scoped, tag = 'output window, operand 1, single buffered']
    #allocation3 [shape = 's32[1]{0}', space=sflag, size = 0x4, scoped, tag = 'scoped memory for tpu_custom_call.1']
    %18 = vsyncpa [#allocation3], 0
    // Predicated region
    $region2: #{tpu_custom_call.1} parent=1 // pred_check
      _
    $region3: #{tpu_custom_call.1} parent=1 // pred_check_branch
      %20 = sbr.rel (0) target = $region5
    $region4: #{tpu_custom_call.1} parent=1 // pred_region
      _
    $region5: #{tpu_custom_call.1} parent=1 // pred_fallthru
      _
    // Predicated region
    $region6: #{tpu_custom_call.1} parent=1 // pred_check
      _
    $region7: #{tpu_custom_call.1} parent=1 // pred_check_branch
      %22 = sbr.rel (0) target = $region9
    $region8: #{tpu_custom_call.1} parent=1 // pred_region
      _
    $region9: #{tpu_custom_call.1} parent=1 // pred_fallthru
      _
    // Predicated region
    $region10: #{tpu_custom_call.1} parent=1 // pred_check
      _
    $region11: #{tpu_custom_call.1} parent=1 // pred_check_branch
      %24 = sbr.rel (0) target = $region13
    $region12: #{tpu_custom_call.1} parent=1 // pred_region
      _
    $region13: #{tpu_custom_call.1} parent=1 // pred_fallthru
      _
    // Predicated region
    $region14: #{tpu_custom_call.1} parent=1 // pred_check
      _
    $region15: #{tpu_custom_call.1} parent=1 // pred_check_branch
      %26 = sbr.rel (0) target = $region17
    $region16: #{tpu_custom_call.1} parent=1 // pred_region
      _
    $region17: #{tpu_custom_call.1} parent=1 // pred_fallthru
      _
    // Predicated region
    $region18: #{tpu_custom_call.1} parent=1 // pred_check
      _
    $region19: #{tpu_custom_call.1} parent=1 // pred_check_branch
      %28 = sbr.rel (0) target = $region21
    $region20: #{tpu_custom_call.1} parent=1 // pred_region
      _
    $region21: #{tpu_custom_call.1} parent=1 // pred_fallthru
      _
    // Predicated region
    $region22: #{tpu_custom_call.1} parent=1 // pred_check
      _
    $region23: #{tpu_custom_call.1} parent=1 // pred_check_branch
      %30 = sbr.rel (0) target = $region25
    $region24: #{tpu_custom_call.1} parent=1 // pred_region
      _
    $region25: #{tpu_custom_call.1} parent=1 // pred_fallthru
      _
    // Predicated region
    $region26: #{tpu_custom_call.1} parent=1 // pred_check
      _
    $region27: #{tpu_custom_call.1} parent=1 // pred_check_branch
      %32 = sbr.rel (0) target = $region29
    $region28: #{tpu_custom_call.1} parent=1 // pred_region
      _
    $region29: #{tpu_custom_call.1} parent=1 // pred_fallthru
      _
    // Predicated region
    $region30: #{tpu_custom_call.1} parent=1 // pred_check
      _
    $region31: #{tpu_custom_call.1} parent=1 // pred_check_branch
      %34 = sbr.rel (0) target = $region33
    $region32: #{tpu_custom_call.1} parent=1 // pred_region
      _
    $region33: #{tpu_custom_call.1} parent=1 // pred_fallthru
      _
    // Predicated region
    $region34: #{tpu_custom_call.1} parent=1 // pred_check
      _
    $region35: #{tpu_custom_call.1} parent=1 // pred_check_branch
      %36 = sbr.rel (0) target = $region37
    $region36: #{tpu_custom_call.1} parent=1 // pred_region
      _
    $region37: #{tpu_custom_call.1} parent=1 // pred_fallthru
      _
    // Predicated region
    $region38: #{tpu_custom_call.1} parent=1 // pred_check
      _
    $region39: #{tpu_custom_call.1} parent=1 // pred_check_branch
      %38 = sbr.rel (0) target = $region41
    $region40: #{tpu_custom_call.1} parent=1 // pred_region
      _
    $region41: #{tpu_custom_call.1} parent=1 // pred_fallthru
      _
    // Predicated region
    $region42: #{tpu_custom_call.1} parent=1 // pred_check
      _
    $region43: #{tpu_custom_call.1} parent=1 // pred_check_branch
      %40 = sbr.rel (0) target = $region45
    $region44: #{tpu_custom_call.1} parent=1 // pred_region
      _
    $region45: #{tpu_custom_call.1} parent=1 // pred_fallthru
      _
    %v41 = vld [vmem:[%s0] sm:$0xff]
    %v42 = vld [vmem:[%s0 + $0x8] sm:$0xff]
    %v43 = vld [vmem:[%s3] sm:$0xff]
    %v44 = vld [vmem:[%s4] sm:$0xff]
    %v45 = vld [vmem:[%s5] sm:$0xff]
    %v46 = vld [vmem:[%s6] sm:$0xff]
    %48 = vset.pattern.permute.xlu0 0
    %49 = vperm.xlu0 %48, %v44
    %v50 = vpop.permute.xlu0 %49
    %vm52 = vcmask 130048
    %v54 = vsel %vm52, %v43, 0
    %56 = vmatprep.subr.mxu0 0.0
    %57 = vmatpush1.msra.mxu0 0.0
    %58 = vmatprep.subr.mxu0 0.0
    %59 = vmatpush1.msra.mxu0 0.0
    %60 = vmatprep.subr.mxu0 0.0
    %61 = vmatpush1.msra.mxu0 0.0
    %62 = vmatprep.subr.mxu0 0.0
    %63 = vmatpush1.msra.mxu0 0.0
    %64 = vmatprep.subr.mxu0 0.0
    %65 = vmatpush1.msra.mxu0 0.0
    %66 = vmatprep.subr.mxu0 0.0
    %67 = vmatpush1.msra.mxu0 0.0
    %68 = vmatprep.subr.mxu0 0.0
    %69 = vmatpush1.msra.mxu0 0.0
    %70 = vmatprep.subr.mxu0 0.0
    %71 = vmatpush1.msra.mxu0 0.0
    %72 = vmatprep.subr.mxu0 0.0
    %73 = vmatpush1.msra.mxu0 0.0
    %74 = vmatprep.subr.mxu0 0.0
    %75 = vmatpush1.msra.mxu0 0.0
    %76 = vmatprep.subr.mxu0 0.0
    %77 = vmatpush1.msra.mxu0 0.0
    %78 = vmatprep.subr.mxu0 0.0
    %79 = vmatpush1.msra.mxu0 0.0
    %80 = vmatprep.subr.mxu0 0.0
    %81 = vmatpush1.msra.mxu0 0.0
    %82 = vmatprep.subr.mxu0 0.0
    %83 = vmatpush1.msra.mxu0 0.0
    %84 = vmatprep.subr.mxu0 0.0
    %85 = vmatpush1.msra.mxu0 %v42
    %86 = vmatprep.subr.mxu0 0.0
    %87 = vmatpush1.msra.mxu0 %v41
    %88 = vmatprep.subr.mxu0 0.0
    %89 = vmatpush2.msra.mxu0 0.0
    %90 = vmatprep.subr.mxu0 0.0
    %91 = vmatpush2.msra.mxu0 0.0
    %92 = vmatprep.subr.mxu0 0.0
    %93 = vmatpush2.msra.mxu0 0.0
    %94 = vmatprep.subr.mxu0 0.0
    %95 = vmatpush2.msra.mxu0 0.0
    %96 = vmatprep.subr.mxu0 0.0
    %97 = vmatpush2.msra.mxu0 0.0
    %98 = vmatprep.subr.mxu0 0.0
    %99 = vmatpush2.msra.mxu0 0.0
    %100 = vmatprep.subr.mxu0 0.0
    %101 = vmatpush2.msra.mxu0 0.0
    %102 = vmatprep.subr.mxu0 0.0
    %103 = vmatpush2.msra.mxu0 0.0
    %104 = vmatprep.subr.mxu0 0.0
    %105 = vmatpush2.msra.mxu0 0.0
    %106 = vmatprep.subr.mxu0 0.0
    %107 = vmatpush2.msra.mxu0 0.0
    %108 = vmatprep.subr.mxu0 0.0
    %109 = vmatpush2.msra.mxu0 0.0
    %110 = vmatprep.subr.mxu0 0.0
    %111 = vmatpush2.msra.mxu0 0.0
    %112 = vmatprep.subr.mxu0 0.0
    %113 = vmatpush2.msra.mxu0 0.0
    %114 = vmatprep.subr.mxu0 0.0
    %115 = vmatpush2.msra.mxu0 0.0
    %116 = vmatprep.subr.mxu0 0.0
    %117 = vmatpush2.msra.mxu0 0.0
    %118 = vmatprep.subr.mxu0 0.0
    %119 = vmatpush2.msra.mxu0 0.0
    %120 = vmatprep.mubr.f32.mxu0 0.0
    %121 = vmatmul.mubr.f32.gmra.mxu0 %v54
    %v122 = vpop.f32.mrf.mxu0
    %v123 = vadd.f32 %v50, %v122
    %v124 = vpop.f32.mrf.mxu0
    %125 = vdwg.mxu0
    %v126 = vmul.f32 %v123, 0.5
    %v127 = vmul.f32 %v123, 0.70710677
    %v128 = verf.f32.pop %v127
    %v129 = vadd.f32 %v128, 1.0
    %v130 = vmul.f32 %v126, %v129
    %132 = vset.pattern.permute.xlu0 0
    %133 = vperm.xlu0 %132, %v46
    %v134 = vpop.permute.xlu0 %133
    %vm136 = vcmask 64512
    %v138 = vsel %vm136, %v45, 0
    %140 = vmatprep.subr.mxu0 0.0
    %141 = vmatpush1.msra.mxu0 0.0
    %142 = vmatprep.subr.mxu0 0.0
    %143 = vmatpush1.msra.mxu0 0.0
    %144 = vmatprep.subr.mxu0 0.0
    %145 = vmatpush1.msra.mxu0 0.0
    %146 = vmatprep.subr.mxu0 0.0
    %147 = vmatpush1.msra.mxu0 0.0
    %148 = vmatprep.subr.mxu0 0.0
    %149 = vmatpush1.msra.mxu0 0.0
    %150 = vmatprep.subr.mxu0 0.0
    %151 = vmatpush1.msra.mxu0 0.0
    %152 = vmatprep.subr.mxu0 0.0
    %153 = vmatpush1.msra.mxu0 0.0
    %154 = vmatprep.subr.mxu0 0.0
    %155 = vmatpush1.msra.mxu0 0.0
    %156 = vmatprep.subr.mxu0 0.0
    %157 = vmatpush1.msra.mxu0 0.0
    %158 = vmatprep.subr.mxu0 0.0
    %159 = vmatpush1.msra.mxu0 0.0
    %160 = vmatprep.subr.mxu0 0.0
    %161 = vmatpush1.msra.mxu0 0.0
    %162 = vmatprep.subr.mxu0 0.0
    %163 = vmatpush1.msra.mxu0 0.0
    %164 = vmatprep.subr.mxu0 0.0
    %165 = vmatpush1.msra.mxu0 0.0
    %166 = vmatprep.subr.mxu0 0.0
    %167 = vmatpush1.msra.mxu0 0.0
    %168 = vmatprep.subr.mxu0 0.0
    %169 = vmatpush1.msra.mxu0 0.0
    %170 = vmatprep.subr.mxu0 0.0
    %171 = vmatpush1.msra.mxu0 %v130
    %172 = vmatprep.subr.mxu0 0.0
    %173 = vmatpush2.msra.mxu0 0.0
    %174 = vmatprep.subr.mxu0 0.0
    %175 = vmatpush2.msra.mxu0 0.0
    %176 = vmatprep.subr.mxu0 0.0
    %177 = vmatpush2.msra.mxu0 0.0
    %178 = vmatprep.subr.mxu0 0.0
    %179 = vmatpush2.msra.mxu0 0.0
    %180 = vmatprep.subr.mxu0 0.0
    %181 = vmatpush2.msra.mxu0 0.0
    %182 = vmatprep.subr.mxu0 0.0
    %183 = vmatpush2.msra.mxu0 0.0
    %184 = vmatprep.subr.mxu0 0.0
    %185 = vmatpush2.msra.mxu0 0.0
    %186 = vmatprep.subr.mxu0 0.0
    %187 = vmatpush2.msra.mxu0 0.0
    %188 = vmatprep.subr.mxu0 0.0
    %189 = vmatpush2.msra.mxu0 0.0
    %190 = vmatprep.subr.mxu0 0.0
    %191 = vmatpush2.msra.mxu0 0.0
    %192 = vmatprep.subr.mxu0 0.0
    %193 = vmatpush2.msra.mxu0 0.0
    %194 = vmatprep.subr.mxu0 0.0
    %195 = vmatpush2.msra.mxu0 0.0
    %196 = vmatprep.subr.mxu0 0.0
    %197 = vmatpush2.msra.mxu0 0.0
    %198 = vmatprep.subr.mxu0 0.0
    %199 = vmatpush2.msra.mxu0 0.0
    %200 = vmatprep.subr.mxu0 0.0
    %201 = vmatpush2.msra.mxu0 0.0
    %202 = vmatprep.subr.mxu0 0.0
    %203 = vmatpush2.msra.mxu0 0.0
    %204 = vmatprep.mubr.f32.mxu0 0.0
    %205 = vmatmul.mubr.f32.gmra.mxu0 %v138
    %v206 = vpop.f32.mrf.mxu0
    %v207 = vadd.f32 %v134, %v206
    %v208 = vpop.f32.mrf.mxu0
    %209 = vdwg.mxu0
    %v210 = vld [vmem:[%s1] sm:$0xff]
    %v211 = vadd.f32 %v210, %v207
    %vm212 = vcmask 31744
    %213 = vst.msk [vmem:[%s11] sm:$0xff] %vm212, %v211
    %v214 = vld [vmem:[%s7] sm:$0xf]
    %v215 = vld [vmem:[%s8] sm:$0xf]
    %v216 = vld [vmem:[%s9] sm:$0xf]
    %v217 = vld [vmem:[%s10] sm:$0xf]
    %219 = vset.pattern.permute.xlu0 0
    %220 = vperm.xlu0 %219, %v215
    %v221 = vpop.permute.xlu0 %220
    %v224 = vsel %vm136, %v214, 0
    %226 = vmatprep.subr.mxu0 0.0
    %227 = vmatpush1.msra.mxu0 0.0
    %228 = vmatprep.subr.mxu0 0.0
    %229 = vmatpush1.msra.mxu0 0.0
    %230 = vmatprep.subr.mxu0 0.0
    %231 = vmatpush1.msra.mxu0 0.0
    %232 = vmatprep.subr.mxu0 0.0
    %233 = vmatpush1.msra.mxu0 0.0
    %234 = vmatprep.subr.mxu0 0.0
    %235 = vmatpush1.msra.mxu0 0.0
    %236 = vmatprep.subr.mxu0 0.0
    %237 = vmatpush1.msra.mxu0 0.0
    %238 = vmatprep.subr.mxu0 0.0
    %239 = vmatpush1.msra.mxu0 0.0
    %240 = vmatprep.subr.mxu0 0.0
    %241 = vmatpush1.msra.mxu0 0.0
    %242 = vmatprep.subr.mxu0 0.0
    %243 = vmatpush1.msra.mxu0 0.0
    %244 = vmatprep.subr.mxu0 0.0
    %245 = vmatpush1.msra.mxu0 0.0
    %246 = vmatprep.subr.mxu0 0.0
    %247 = vmatpush1.msra.mxu0 0.0
    %248 = vmatprep.subr.mxu0 0.0
    %249 = vmatpush1.msra.mxu0 0.0
    %250 = vmatprep.subr.mxu0 0.0
    %251 = vmatpush1.msra.mxu0 0.0
    %252 = vmatprep.subr.mxu0 0.0
    %253 = vmatpush1.msra.mxu0 0.0
    %254 = vmatprep.subr.mxu0 0.0
    %255 = vmatpush1.msra.mxu0 0.0
    %256 = vmatprep.subr.mxu0 0.0
    %257 = vmatpush1.msra.mxu0 %v211
    %258 = vmatprep.subr.mxu0 0.0
    %259 = vmatpush2.msra.mxu0 0.0
    %260 = vmatprep.subr.mxu0 0.0
    %261 = vmatpush2.msra.mxu0 0.0
    %262 = vmatprep.subr.mxu0 0.0
    %263 = vmatpush2.msra.mxu0 0.0
    %264 = vmatprep.subr.mxu0 0.0
    %265 = vmatpush2.msra.mxu0 0.0
    %266 = vmatprep.subr.mxu0 0.0
    %267 = vmatpush2.msra.mxu0 0.0
    %268 = vmatprep.subr.mxu0 0.0
    %269 = vmatpush2.msra.mxu0 0.0
    %270 = vmatprep.subr.mxu0 0.0
    %271 = vmatpush2.msra.mxu0 0.0
    %272 = vmatprep.subr.mxu0 0.0
    %273 = vmatpush2.msra.mxu0 0.0
    %274 = vmatprep.subr.mxu0 0.0
    %275 = vmatpush2.msra.mxu0 0.0
    %276 = vmatprep.subr.mxu0 0.0
    %277 = vmatpush2.msra.mxu0 0.0
    %278 = vmatprep.subr.mxu0 0.0
    %279 = vmatpush2.msra.mxu0 0.0
    %280 = vmatprep.subr.mxu0 0.0
    %281 = vmatpush2.msra.mxu0 0.0
    %282 = vmatprep.subr.mxu0 0.0
    %283 = vmatpush2.msra.mxu0 0.0
    %284 = vmatprep.subr.mxu0 0.0
    %285 = vmatpush2.msra.mxu0 0.0
    %286 = vmatprep.subr.mxu0 0.0
    %287 = vmatpush2.msra.mxu0 0.0
    %288 = vmatprep.subr.mxu0 0.0
    %289 = vmatpush2.msra.mxu0 0.0
    %290 = vmatprep.mubr.f32.mxu0 0.0
    %291 = vmatmul.mubr.f32.gmra.mxu0 %v224
    %v292 = vpop.f32.mrf.mxu0
    %v293 = vadd.f32 %v221, %v292
    %v294 = vpop.f32.mrf.mxu0
    %295 = vdwg.mxu0
    %v296 = vmul.f32 %v293, 0.5
    %v297 = vmul.f32 %v293, 0.70710677
    %v298 = verf.f32.pop %v297
    %v299 = vadd.f32 %v298, 1.0
    %v300 = vmul.f32 %v296, %v299
    %302 = vset.pattern.permute.xlu0 0
    %303 = vperm.xlu0 %302, %v217
    %v304 = vpop.permute.xlu0 %303
    %v307 = vsel %vm212, %v216, 0
    %vm309 = vcmask 1043456
    %v311 = vsel %vm309, %v300, 0
    %313 = vmatprep.subr.mxu0 0.0
    %314 = vmatpush1.msra.mxu0 0.0
    %315 = vmatprep.subr.mxu0 0.0
    %316 = vmatpush1.msra.mxu0 0.0
    %317 = vmatprep.subr.mxu0 0.0
    %318 = vmatpush1.msra.mxu0 0.0
    %319 = vmatprep.subr.mxu0 0.0
    %320 = vmatpush1.msra.mxu0 0.0
    %321 = vmatprep.subr.mxu0 0.0
    %322 = vmatpush1.msra.mxu0 0.0
    %323 = vmatprep.subr.mxu0 0.0
    %324 = vmatpush1.msra.mxu0 0.0
    %325 = vmatprep.subr.mxu0 0.0
    %326 = vmatpush1.msra.mxu0 0.0
    %327 = vmatprep.subr.mxu0 0.0
    %328 = vmatpush1.msra.mxu0 0.0
    %329 = vmatprep.subr.mxu0 0.0
    %330 = vmatpush1.msra.mxu0 0.0
    %331 = vmatprep.subr.mxu0 0.0
    %332 = vmatpush1.msra.mxu0 0.0
    %333 = vmatprep.subr.mxu0 0.0
    %334 = vmatpush1.msra.mxu0 0.0
    %335 = vmatprep.subr.mxu0 0.0
    %336 = vmatpush1.msra.mxu0 0.0
    %337 = vmatprep.subr.mxu0 0.0
    %338 = vmatpush1.msra.mxu0 0.0
    %339 = vmatprep.subr.mxu0 0.0
    %340 = vmatpush1.msra.mxu0 0.0
    %341 = vmatprep.subr.mxu0 0.0
    %342 = vmatpush1.msra.mxu0 0.0
    %343 = vmatprep.subr.mxu0 0.0
    %344 = vmatpush1.msra.mxu0 %v311
    %345 = vmatprep.subr.mxu0 0.0
    %346 = vmatpush2.msra.mxu0 0.0
    %347 = vmatprep.subr.mxu0 0.0
    %348 = vmatpush2.msra.mxu0 0.0
    %349 = vmatprep.subr.mxu0 0.0
    %350 = vmatpush2.msra.mxu0 0.0
    %351 = vmatprep.subr.mxu0 0.0
    %352 = vmatpush2.msra.mxu0 0.0
    %353 = vmatprep.subr.mxu0 0.0
    %354 = vmatpush2.msra.mxu0 0.0
    %355 = vmatprep.subr.mxu0 0.0
    %356 = vmatpush2.msra.mxu0 0.0
    %357 = vmatprep.subr.mxu0 0.0
    %358 = vmatpush2.msra.mxu0 0.0
    %359 = vmatprep.subr.mxu0 0.0
    %360 = vmatpush2.msra.mxu0 0.0
    %361 = vmatprep.subr.mxu0 0.0
    %362 = vmatpush2.msra.mxu0 0.0
    %363 = vmatprep.subr.mxu0 0.0
    %364 = vmatpush2.msra.mxu0 0.0
    %365 = vmatprep.subr.mxu0 0.0
    %366 = vmatpush2.msra.mxu0 0.0
    %367 = vmatprep.subr.mxu0 0.0
    %368 = vmatpush2.msra.mxu0 0.0
    %369 = vmatprep.subr.mxu0 0.0
    %370 = vmatpush2.msra.mxu0 0.0
    %371 = vmatprep.subr.mxu0 0.0
    %372 = vmatpush2.msra.mxu0 0.0
    %373 = vmatprep.subr.mxu0 0.0
    %374 = vmatpush2.msra.mxu0 0.0
    %375 = vmatprep.subr.mxu0 0.0
    %376 = vmatpush2.msra.mxu0 0.0
    %377 = vmatprep.mubr.f32.mxu0 0.0
    %378 = vmatmul.mubr.f32.gmra.mxu0 %v307
    %v379 = vpop.f32.mrf.mxu0
    %v380 = vadd.f32 %v304, %v379
    %v381 = vpop.f32.mrf.mxu0
    %382 = vdwg.mxu0
    %v383 = vld [vmem:[%s2] sm:$0xf]
    %v384 = vadd.f32 %v383, %v380
    %vm385 = vcmask 27648
    %386 = vst.msk [vmem:[#allocation2] sm:$0xf] %vm385, %v384
    %s387 = scalar_lea.vmem %s0, 16
    %v388 = vld [vmem:[%s387] sm:$0xff]
    %v389 = vld [vmem:[%s387 + $0x8] sm:$0xff]
    %v390 = vld [vmem:[%s3] sm:$0xff]
    %v391 = vld [vmem:[%s4] sm:$0xff]
    %v392 = vld [vmem:[%s5] sm:$0xff]
    %v393 = vld [vmem:[%s6] sm:$0xff]
    %395 = vset.pattern.permute.xlu0 0
    %396 = vperm.xlu0 %395, %v391
    %v397 = vpop.permute.xlu0 %396
    %v400 = vsel %vm52, %v390, 0
    %402 = vmatprep.subr.mxu0 0.0
    %403 = vmatpush1.msra.mxu0 0.0
    %404 = vmatprep.subr.mxu0 0.0
    %405 = vmatpush1.msra.mxu0 0.0
    %406 = vmatprep.subr.mxu0 0.0
    %407 = vmatpush1.msra.mxu0 0.0
    %408 = vmatprep.subr.mxu0 0.0
    %409 = vmatpush1.msra.mxu0 0.0
    %410 = vmatprep.subr.mxu0 0.0
    %411 = vmatpush1.msra.mxu0 0.0
    %412 = vmatprep.subr.mxu0 0.0
    %413 = vmatpush1.msra.mxu0 0.0
    %414 = vmatprep.subr.mxu0 0.0
    %415 = vmatpush1.msra.mxu0 0.0
    %416 = vmatprep.subr.mxu0 0.0
    %417 = vmatpush1.msra.mxu0 0.0
    %418 = vmatprep.subr.mxu0 0.0
    %419 = vmatpush1.msra.mxu0 0.0
    %420 = vmatprep.subr.mxu0 0.0
    %421 = vmatpush1.msra.mxu0 0.0
    %422 = vmatprep.subr.mxu0 0.0
    %423 = vmatpush1.msra.mxu0 0.0
    %424 = vmatprep.subr.mxu0 0.0
    %425 = vmatpush1.msra.mxu0 0.0
    %426 = vmatprep.subr.mxu0 0.0
    %427 = vmatpush1.msra.mxu0 0.0
    %428 = vmatprep.subr.mxu0 0.0
    %429 = vmatpush1.msra.mxu0 0.0
    %430 = vmatprep.subr.mxu0 0.0
    %431 = vmatpush1.msra.mxu0 %v389
    %432 = vmatprep.subr.mxu0 0.0
    %433 = vmatpush1.msra.mxu0 %v388
    %434 = vmatprep.subr.mxu0 0.0
    %435 = vmatpush2.msra.mxu0 0.0
    %436 = vmatprep.subr.mxu0 0.0
    %437 = vmatpush2.msra.mxu0 0.0
    %438 = vmatprep.subr.mxu0 0.0
    %439 = vmatpush2.msra.mxu0 0.0
    %440 = vmatprep.subr.mxu0 0.0
    %441 = vmatpush2.msra.mxu0 0.0
    %442 = vmatprep.subr.mxu0 0.0
    %443 = vmatpush2.msra.mxu0 0.0
    %444 = vmatprep.subr.mxu0 0.0
    %445 = vmatpush2.msra.mxu0 0.0
    %446 = vmatprep.subr.mxu0 0.0
    %447 = vmatpush2.msra.mxu0 0.0
    %448 = vmatprep.subr.mxu0 0.0
    %449 = vmatpush2.msra.mxu0 0.0
    %450 = vmatprep.subr.mxu0 0.0
    %451 = vmatpush2.msra.mxu0 0.0
    %452 = vmatprep.subr.mxu0 0.0
    %453 = vmatpush2.msra.mxu0 0.0
    %454 = vmatprep.subr.mxu0 0.0
    %455 = vmatpush2.msra.mxu0 0.0
    %456 = vmatprep.subr.mxu0 0.0
    %457 = vmatpush2.msra.mxu0 0.0
    %458 = vmatprep.subr.mxu0 0.0
    %459 = vmatpush2.msra.mxu0 0.0
    %460 = vmatprep.subr.mxu0 0.0
    %461 = vmatpush2.msra.mxu0 0.0
    %462 = vmatprep.subr.mxu0 0.0
    %463 = vmatpush2.msra.mxu0 0.0
    %464 = vmatprep.subr.mxu0 0.0
    %465 = vmatpush2.msra.mxu0 0.0
    %466 = vmatprep.mubr.f32.mxu0 0.0
    %467 = vmatmul.mubr.f32.gmra.mxu0 %v400
    %v468 = vpop.f32.mrf.mxu0
    %v469 = vadd.f32 %v397, %v468
    %v470 = vpop.f32.mrf.mxu0
    %471 = vdwg.mxu0
    %v472 = vmul.f32 %v469, 0.5
    %v473 = vmul.f32 %v469, 0.70710677
    %v474 = verf.f32.pop %v473
    %v475 = vadd.f32 %v474, 1.0
    %v476 = vmul.f32 %v472, %v475
    %478 = vset.pattern.permute.xlu0 0
    %479 = vperm.xlu0 %478, %v393
    %v480 = vpop.permute.xlu0 %479
    %v483 = vsel %vm136, %v392, 0
    %485 = vmatprep.subr.mxu0 0.0
    %486 = vmatpush1.msra.mxu0 0.0
    %487 = vmatprep.subr.mxu0 0.0
    %488 = vmatpush1.msra.mxu0 0.0
    %489 = vmatprep.subr.mxu0 0.0
    %490 = vmatpush1.msra.mxu0 0.0
    %491 = vmatprep.subr.mxu0 0.0
    %492 = vmatpush1.msra.mxu0 0.0
    %493 = vmatprep.subr.mxu0 0.0
    %494 = vmatpush1.msra.mxu0 0.0
    %495 = vmatprep.subr.mxu0 0.0
    %496 = vmatpush1.msra.mxu0 0.0
    %497 = vmatprep.subr.mxu0 0.0
    %498 = vmatpush1.msra.mxu0 0.0
    %499 = vmatprep.subr.mxu0 0.0
    %500 = vmatpush1.msra.mxu0 0.0
    %501 = vmatprep.subr.mxu0 0.0
    %502 = vmatpush1.msra.mxu0 0.0
    %503 = vmatprep.subr.mxu0 0.0
    %504 = vmatpush1.msra.mxu0 0.0
    %505 = vmatprep.subr.mxu0 0.0
    %506 = vmatpush1.msra.mxu0 0.0
    %507 = vmatprep.subr.mxu0 0.0
    %508 = vmatpush1.msra.mxu0 0.0
    %509 = vmatprep.subr.mxu0 0.0
    %510 = vmatpush1.msra.mxu0 0.0
    %511 = vmatprep.subr.mxu0 0.0
    %512 = vmatpush1.msra.mxu0 0.0
    %513 = vmatprep.subr.mxu0 0.0
    %514 = vmatpush1.msra.mxu0 0.0
    %515 = vmatprep.subr.mxu0 0.0
    %516 = vmatpush1.msra.mxu0 %v476
    %517 = vmatprep.subr.mxu0 0.0
    %518 = vmatpush2.msra.mxu0 0.0
    %519 = vmatprep.subr.mxu0 0.0
    %520 = vmatpush2.msra.mxu0 0.0
    %521 = vmatprep.subr.mxu0 0.0
    %522 = vmatpush2.msra.mxu0 0.0
    %523 = vmatprep.subr.mxu0 0.0
    %524 = vmatpush2.msra.mxu0 0.0
    %525 = vmatprep.subr.mxu0 0.0
    %526 = vmatpush2.msra.mxu0 0.0
    %527 = vmatprep.subr.mxu0 0.0
    %528 = vmatpush2.msra.mxu0 0.0
    %529 = vmatprep.subr.mxu0 0.0
    %530 = vmatpush2.msra.mxu0 0.0
    %531 = vmatprep.subr.mxu0 0.0
    %532 = vmatpush2.msra.mxu0 0.0
    %533 = vmatprep.subr.mxu0 0.0
    %534 = vmatpush2.msra.mxu0 0.0
    %535 = vmatprep.subr.mxu0 0.0
    %536 = vmatpush2.msra.mxu0 0.0
    %537 = vmatprep.subr.mxu0 0.0
    %538 = vmatpush2.msra.mxu0 0.0
    %539 = vmatprep.subr.mxu0 0.0
    %540 = vmatpush2.msra.mxu0 0.0
    %541 = vmatprep.subr.mxu0 0.0
    %542 = vmatpush2.msra.mxu0 0.0
    %543 = vmatprep.subr.mxu0 0.0
    %544 = vmatpush2.msra.mxu0 0.0
    %545 = vmatprep.subr.mxu0 0.0
    %546 = vmatpush2.msra.mxu0 0.0
    %547 = vmatprep.subr.mxu0 0.0
    %548 = vmatpush2.msra.mxu0 0.0
    %549 = vmatprep.mubr.f32.mxu0 0.0
    %550 = vmatmul.mubr.f32.gmra.mxu0 %v483
    %v551 = vpop.f32.mrf.mxu0
    %v552 = vadd.f32 %v480, %v551
    %v553 = vpop.f32.mrf.mxu0
    %554 = vdwg.mxu0
    %s555 = scalar_lea.vmem %s1, 8
    %v556 = vld [vmem:[%s555] sm:$0xff]
    %v557 = vadd.f32 %v556, %v552
    %s558 = scalar_lea.vmem %s11, 8
    %559 = vst.msk [vmem:[%s558] sm:$0xff] %vm212, %v557
    %v560 = vld [vmem:[%s7] sm:$0xf]
    %v561 = vld [vmem:[%s8] sm:$0xf]
    %v562 = vld [vmem:[%s9] sm:$0xf]
    %v563 = vld [vmem:[%s10] sm:$0xf]
    %565 = vset.pattern.permute.xlu0 0
    %566 = vperm.xlu0 %565, %v561
    %v567 = vpop.permute.xlu0 %566
    %v570 = vsel %vm136, %v560, 0
    %572 = vmatprep.subr.mxu0 0.0
    %573 = vmatpush1.msra.mxu0 0.0
    %574 = vmatprep.subr.mxu0 0.0
    %575 = vmatpush1.msra.mxu0 0.0
    %576 = vmatprep.subr.mxu0 0.0
    %577 = vmatpush1.msra.mxu0 0.0
    %578 = vmatprep.subr.mxu0 0.0
    %579 = vmatpush1.msra.mxu0 0.0
    %580 = vmatprep.subr.mxu0 0.0
    %581 = vmatpush1.msra.mxu0 0.0
    %582 = vmatprep.subr.mxu0 0.0
    %583 = vmatpush1.msra.mxu0 0.0
    %584 = vmatprep.subr.mxu0 0.0
    %585 = vmatpush1.msra.mxu0 0.0
    %586 = vmatprep.subr.mxu0 0.0
    %587 = vmatpush1.msra.mxu0 0.0
    %588 = vmatprep.subr.mxu0 0.0
    %589 = vmatpush1.msra.mxu0 0.0
    %590 = vmatprep.subr.mxu0 0.0
    %591 = vmatpush1.msra.mxu0 0.0
    %592 = vmatprep.subr.mxu0 0.0
    %593 = vmatpush1.msra.mxu0 0.0
    %594 = vmatprep.subr.mxu0 0.0
    %595 = vmatpush1.msra.mxu0 0.0
    %596 = vmatprep.subr.mxu0 0.0
    %597 = vmatpush1.msra.mxu0 0.0
    %598 = vmatprep.subr.mxu0 0.0
    %599 = vmatpush1.msra.mxu0 0.0
    %600 = vmatprep.subr.mxu0 0.0
    %601 = vmatpush1.msra.mxu0 0.0
    %602 = vmatprep.subr.mxu0 0.0
    %603 = vmatpush1.msra.mxu0 %v557
    %604 = vmatprep.subr.mxu0 0.0
    %605 = vmatpush2.msra.mxu0 0.0
    %606 = vmatprep.subr.mxu0 0.0
    %607 = vmatpush2.msra.mxu0 0.0
    %608 = vmatprep.subr.mxu0 0.0
    %609 = vmatpush2.msra.mxu0 0.0
    %610 = vmatprep.subr.mxu0 0.0
    %611 = vmatpush2.msra.mxu0 0.0
    %612 = vmatprep.subr.mxu0 0.0
    %613 = vmatpush2.msra.mxu0 0.0
    %614 = vmatprep.subr.mxu0 0.0
    %615 = vmatpush2.msra.mxu0 0.0
    %616 = vmatprep.subr.mxu0 0.0
    %617 = vmatpush2.msra.mxu0 0.0
    %618 = vmatprep.subr.mxu0 0.0
    %619 = vmatpush2.msra.mxu0 0.0
    %620 = vmatprep.subr.mxu0 0.0
    %621 = vmatpush2.msra.mxu0 0.0
    %622 = vmatprep.subr.mxu0 0.0
    %623 = vmatpush2.msra.mxu0 0.0
    %624 = vmatprep.subr.mxu0 0.0
    %625 = vmatpush2.msra.mxu0 0.0
    %626 = vmatprep.subr.mxu0 0.0
    %627 = vmatpush2.msra.mxu0 0.0
    %628 = vmatprep.subr.mxu0 0.0
    %629 = vmatpush2.msra.mxu0 0.0
    %630 = vmatprep.subr.mxu0 0.0
    %631 = vmatpush2.msra.mxu0 0.0
    %632 = vmatprep.subr.mxu0 0.0
    %633 = vmatpush2.msra.mxu0 0.0
    %634 = vmatprep.subr.mxu0 0.0
    %635 = vmatpush2.msra.mxu0 0.0
    %636 = vmatprep.mubr.f32.mxu0 0.0
    %637 = vmatmul.mubr.f32.gmra.mxu0 %v570
    %v638 = vpop.f32.mrf.mxu0
    %v639 = vadd.f32 %v567, %v638
    %v640 = vpop.f32.mrf.mxu0
    %641 = vdwg.mxu0
    %v642 = vmul.f32 %v639, 0.5
    %v643 = vmul.f32 %v639, 0.70710677
    %v644 = verf.f32.pop %v643
    %v645 = vadd.f32 %v644, 1.0
    %v646 = vmul.f32 %v642, %v645
    %648 = vset.pattern.permute.xlu0 0
    %649 = vperm.xlu0 %648, %v563
    %v650 = vpop.permute.xlu0 %649
    %v653 = vsel %vm212, %v562, 0
    %v656 = vsel %vm309, %v646, 0
    %658 = vmatprep.subr.mxu0 0.0
    %659 = vmatpush1.msra.mxu0 0.0
    %660 = vmatprep.subr.mxu0 0.0
    %661 = vmatpush1.msra.mxu0 0.0
    %662 = vmatprep.subr.mxu0 0.0
    %663 = vmatpush1.msra.mxu0 0.0
    %664 = vmatprep.subr.mxu0 0.0
    %665 = vmatpush1.msra.mxu0 0.0
    %666 = vmatprep.subr.mxu0 0.0
    %667 = vmatpush1.msra.mxu0 0.0
    %668 = vmatprep.subr.mxu0 0.0
    %669 = vmatpush1.msra.mxu0 0.0
    %670 = vmatprep.subr.mxu0 0.0
    %671 = vmatpush1.msra.mxu0 0.0
    %672 = vmatprep.subr.mxu0 0.0
    %673 = vmatpush1.msra.mxu0 0.0
    %674 = vmatprep.subr.mxu0 0.0
    %675 = vmatpush1.msra.mxu0 0.0
    %676 = vmatprep.subr.mxu0 0.0
    %677 = vmatpush1.msra.mxu0 0.0
    %678 = vmatprep.subr.mxu0 0.0
    %679 = vmatpush1.msra.mxu0 0.0
    %680 = vmatprep.subr.mxu0 0.0
    %681 = vmatpush1.msra.mxu0 0.0
    %682 = vmatprep.subr.mxu0 0.0
    %683 = vmatpush1.msra.mxu0 0.0
    %684 = vmatprep.subr.mxu0 0.0
    %685 = vmatpush1.msra.mxu0 0.0
    %686 = vmatprep.subr.mxu0 0.0
    %687 = vmatpush1.msra.mxu0 0.0
    %688 = vmatprep.subr.mxu0 0.0
    %689 = vmatpush1.msra.mxu0 %v656
    %690 = vmatprep.subr.mxu0 0.0
    %691 = vmatpush2.msra.mxu0 0.0
    %692 = vmatprep.subr.mxu0 0.0
    %693 = vmatpush2.msra.mxu0 0.0
    %694 = vmatprep.subr.mxu0 0.0
    %695 = vmatpush2.msra.mxu0 0.0
    %696 = vmatprep.subr.mxu0 0.0
    %697 = vmatpush2.msra.mxu0 0.0
    %698 = vmatprep.subr.mxu0 0.0
    %699 = vmatpush2.msra.mxu0 0.0
    %700 = vmatprep.subr.mxu0 0.0
    %701 = vmatpush2.msra.mxu0 0.0
    %702 = vmatprep.subr.mxu0 0.0
    %703 = vmatpush2.msra.mxu0 0.0
    %704 = vmatprep.subr.mxu0 0.0
    %705 = vmatpush2.msra.mxu0 0.0
    %706 = vmatprep.subr.mxu0 0.0
    %707 = vmatpush2.msra.mxu0 0.0
    %708 = vmatprep.subr.mxu0 0.0
    %709 = vmatpush2.msra.mxu0 0.0
    %710 = vmatprep.subr.mxu0 0.0
    %711 = vmatpush2.msra.mxu0 0.0
    %712 = vmatprep.subr.mxu0 0.0
    %713 = vmatpush2.msra.mxu0 0.0
    %714 = vmatprep.subr.mxu0 0.0
    %715 = vmatpush2.msra.mxu0 0.0
    %716 = vmatprep.subr.mxu0 0.0
    %717 = vmatpush2.msra.mxu0 0.0
    %718 = vmatprep.subr.mxu0 0.0
    %719 = vmatpush2.msra.mxu0 0.0
    %720 = vmatprep.subr.mxu0 0.0
    %721 = vmatpush2.msra.mxu0 0.0
    %722 = vmatprep.mubr.f32.mxu0 0.0
    %723 = vmatmul.mubr.f32.gmra.mxu0 %v653
    %v724 = vpop.f32.mrf.mxu0
    %v725 = vadd.f32 %v650, %v724
    %v726 = vpop.f32.mrf.mxu0
    %727 = vdwg.mxu0
    %s728 = scalar_lea.vmem %s2, 4
    %v729 = vld [vmem:[%s728] sm:$0xf]
    %v730 = vadd.f32 %v729, %v725
    %s731 = scalar_lea.vmem [#allocation2], 4
    %732 = vst.msk [vmem:[%s731] sm:$0xf] %vm385, %v730
    // Predicated region
    $region46: #{tpu_custom_call.1} parent=1 // pred_check
      _
    $region47: #{tpu_custom_call.1} parent=1 // pred_check_branch
      %734 = sbr.rel (0) target = $region49
    $region48: #{tpu_custom_call.1} parent=1 // pred_region
      _
    $region49: #{tpu_custom_call.1} parent=1 // pred_fallthru
      _
    // Predicated region
    $region50: #{tpu_custom_call.1} parent=1 // pred_check
      _
    $region51: #{tpu_custom_call.1} parent=1 // pred_check_branch
      %736 = sbr.rel (0) target = $region53
    $region52: #{tpu_custom_call.1} parent=1 // pred_region
      %s738 = ssub.s32 128, 128
      %739 = vsyncadd [#allocation3], %s738
      %s740 = sshll.u32 [#allocation2], 4
      %s741 = int_to_ptr.vmem [resolvable:$true] %s740
      %746 = dma.vmem_to_hbm [thread:$0]  %s741, 128, %s12, [#allocation3], 64, 64, 4
    $region53: #{tpu_custom_call.1} parent=1 // pred_fallthru
      _
    // Predicated region
    $region54: #{tpu_custom_call.1} parent=1 // pred_check
      _
    $region55: #{tpu_custom_call.1} parent=1 // pred_check_branch
      %748 = sbr.rel (0) target = $region57
    $region56: #{tpu_custom_call.1} parent=1 // pred_region
      _
    $region57: #{tpu_custom_call.1} parent=1 // pred_fallthru
      _
    // Predicated region
    $region58: #{tpu_custom_call.1} parent=1 // pred_check
      _
    $region59: #{tpu_custom_call.1} parent=1 // pred_check_branch
      %750 = sbr.rel (0) target = $region61
    $region60: #{tpu_custom_call.1} parent=1 // pred_region
      %751 = dma.done [#allocation3], 128
    $region61: #{tpu_custom_call.1} parent=1 // pred_fallthru
      _
    %752 = vsyncpa [#allocation3], 1

</llo_original>
